<compile_context>
chip_gen: v6e
topology: v6e:2x2x1
jax: 0.10.0
libtpu: 0.0.40
codegen_flags: <defaults>
</compile_context>

<pallas_src>
import functools
import math

import jax
import jax.numpy as jnp
from jax.experimental import pallas as pl
from jax.experimental.pallas import tpu as pltpu


def _round_up(x, m):
    return ((x + m - 1) // m) * m


# --------------------------------------------------------------------------
# Kernels
# --------------------------------------------------------------------------

def _gated(acc, b, d_out_p, out_dtype, approx_sigmoid):
    """Bias add + split + sigmoid gate on an f32 (tr, 2*d_out_p) tile."""
    acc = acc + b
    a = acc[:, :d_out_p]           # w1 branch  (lane-aligned static slice)
    g = acc[:, d_out_p:]           # w2 (gate) branch
    if approx_sigmoid:
        # exp + vrcp both run on the EUP slot, idle under the MXU.
        gate = pl.reciprocal(1.0 + jnp.exp(-g), approx=True)
    else:
        gate = jax.nn.sigmoid(g)
    return (a * gate).astype(out_dtype)


def glu_kernel_resident(x_ref, w_ref, b_ref, o_ref, *, d_out_p, approx_sigmoid):
    """One row tile, fused (W1|W2) weight resident in VMEM."""
    # In-kernel cast: activations stream at source width; the cast is VPU
    # filler under the MXU instead of a separate XLA pass over HBM.
    x = x_ref[...].astype(w_ref.dtype)
    acc = jnp.dot(x, w_ref[...], preferred_element_type=jnp.float32)
    o_ref[...] = _gated(acc, b_ref[...], d_out_p, o_ref.dtype, approx_sigmoid)


def glu_kernel_ktiled(x_ref, w_ref, b_ref, o_ref, acc_ref, *, d_out_p,
                      approx_sigmoid):
    """K-tiled fallback: f32 accumulator scratch, finalize on last K step."""
    k = pl.program_id(1)

    @pl.when(k == 0)
    def _():
        acc_ref[...] = jnp.zeros_like(acc_ref)

    x = x_ref[...].astype(w_ref.dtype)
    acc_ref[...] += jnp.dot(x, w_ref[...], preferred_element_type=jnp.float32)

    @pl.when(k == pl.num_programs(1) - 1)
    def _():
        o_ref[...] = _gated(acc_ref[...], b_ref[...], d_out_p, o_ref.dtype,
                            approx_sigmoid)


# --------------------------------------------------------------------------
# Parameter preparation (hoisted, call-once)
# --------------------------------------------------------------------------

def prepare_glu_params(w1, b1, w2, b2, *, compute_dtype=jnp.bfloat16):
    """PyTorch-layout Linear params -> fused Pallas layout.

    w1, w2: (d_out, d_in) -> fused, transposed, 128-padded (d_in, 2*d_out_p)
    b1, b2: (d_out,)      -> fused f32 (1, 2*d_out_p)

    compute_dtype defaults to bf16 (native MXU on v5e/v6e/v7x); the matmul
    still accumulates in f32.  NOTE: on the bf16 path the activations are also
    quantized to bf16 inside the kernel (deliberate precision trade-off); pass
    compute_dtype=jnp.float32 for exact semantics.
    """
    w1 = jnp.asarray(w1)
    w2 = jnp.asarray(w2)
    b1 = jnp.asarray(b1)
    b2 = jnp.asarray(b2)
    d_out, d_in = w1.shape
    d_out_p = _round_up(d_out, 128)          # lane-dense output columns

    def pad_wt(w):
        wt = w.T.astype(compute_dtype)       # (d_in, d_out)
        return jnp.pad(wt, ((0, 0), (0, d_out_p - d_out)))

    def pad_b(b):
        return jnp.pad(b.astype(jnp.float32),
                       (0, d_out_p - d_out)).reshape(1, d_out_p)

    w_fused = jnp.concatenate([pad_wt(w1), pad_wt(w2)], axis=1)  # (d_in, 2*d_out_p)
    b_fused = jnp.concatenate([pad_b(b1), pad_b(b2)], axis=1)    # (1, 2*d_out_p)
    return w_fused, b_fused, d_out, d_out_p


# --------------------------------------------------------------------------
# Forward wrapper
# --------------------------------------------------------------------------

def glu_forward(x, w_fused, b_fused, d_out, d_out_p, *,
                tile_rows=512,
                out_dtype=None,
                input_buffering=2,
                max_resident_weight_bytes=32 * 1024 * 1024,
                k_tile=None,
                vmem_limit_bytes=None):
    """x: (..., d_in). Returns (..., d_out) in out_dtype (default x.dtype)."""
    orig_shape = x.shape
    d_in = orig_shape[-1]
    if out_dtype is None:
        out_dtype = x.dtype
    out_dtype = jnp.dtype(out_dtype)

    # Single HBM pass over the activations: no wrapper-side astype / pad.
    x2d = x.reshape(-1, d_in)
    N = x2d.shape[0]
    n2 = 2 * d_out_p
    approx_sigmoid = (w_fused.dtype == jnp.bfloat16)

    # Row tile: sublane-aligned; shrink for tiny inputs; clamp so the grid has
    # >= 2 iterations when possible (both v7x TensorCores get work).
    row_align = 16
    tr = _round_up(max(1, min(int(tile_rows), N)), row_align)
    tr = max(row_align, min(tr, _round_up(pl.cdiv(max(N, 1), 2), row_align)))
    grid_rows = pl.cdiv(N, tr)

    # Resident-weight fast path vs K-tiled fallback (v7x 64 MiB VMEM/TC).
    w_bytes = int(w_fused.size) * w_fused.dtype.itemsize
    use_k = (k_tile is not None) or (w_bytes > max_resident_weight_bytes)
    tk = None
    if use_k:
        if k_tile is not None and d_in % int(k_tile) == 0 and int(k_tile) % 128 == 0:
            tk = int(k_tile)
        else:
            for cand in (512, 384, 256, 128):
                if d_in % cand == 0:
                    tk = cand
                    break
        if tk is None:
            use_k = False  # cannot tile K cleanly; keep weights resident.

    x_item = x2d.dtype.itemsize
    out_item = out_dtype.itemsize
    w_item = w_fused.dtype.itemsize
    mib = 1024 * 1024
    kern_kw = dict(d_out_p=d_out_p, approx_sigmoid=approx_sigmoid)

    if not use_k:
        est = (w_bytes                                   # resident weight (x1)
               + n2 * 4                                  # resident bias
               + input_buffering * tr * d_in * x_item    # streamed x tiles
               + 2 * tr * d_out_p * out_item             # double-buffered out
               + tr * n2 * 4)                            # f32 epilogue interm.
        limit = vmem_limit_bytes
        if limit is None:
            limit = min(100 * mib, max(32 * mib, int(est * 1.25) + 8 * mib))

        if input_buffering != 2:
            x_spec = pl.BlockSpec((tr, d_in), lambda i: (i, 0),
                                  pipeline_mode=pl.Buffered(input_buffering))
        else:
            x_spec = pl.BlockSpec((tr, d_in), lambda i: (i, 0))

        grid_spec = pltpu.PrefetchScalarGridSpec(
            num_scalar_prefetch=0,
            grid=(grid_rows,),
            in_specs=[
                x_spec,
                # Resident fused weight / bias: constant block index ->
                # single-buffer to halve their VMEM footprint.
                pl.BlockSpec((d_in, n2), lambda i: (0, 0),
                             pipeline_mode=pl.Buffered(1)),
                pl.BlockSpec((1, n2), lambda i: (0, 0),
                             pipeline_mode=pl.Buffered(1)),
            ],
            out_specs=pl.BlockSpec((tr, d_out_p), lambda i: (i, 0)),
        )
        kernel = functools.partial(glu_kernel_resident, **kern_kw)
        dims = ("parallel",)
    else:
        est = (2 * tk * n2 * w_item                      # streamed weight blks
               + n2 * 4
               + input_buffering * tr * tk * x_item
               + 2 * tr * d_out_p * out_item
               + tr * n2 * 4)                            # f32 accumulator
        limit = vmem_limit_bytes
        if limit is None:
            limit = min(100 * mib, max(32 * mib, int(est * 1.25) + 8 * mib))

        grid_spec = pltpu.PrefetchScalarGridSpec(
            num_scalar_prefetch=0,
            grid=(grid_rows, d_in // tk),
            in_specs=[
                pl.BlockSpec((tr, tk), lambda i, k: (i, k)),
                pl.BlockSpec((tk, n2), lambda i, k: (k, 0)),
                pl.BlockSpec((1, n2), lambda i, k: (0, 0),
                             pipeline_mode=pl.Buffered(1)),
            ],
            out_specs=pl.BlockSpec((tr, d_out_p), lambda i, k: (i, 0)),
            scratch_shapes=[pltpu.VMEM((tr, n2), jnp.float32)],
        )
        kernel = functools.partial(glu_kernel_ktiled, **kern_kw)
        dims = ("parallel", "arbitrary")

    y = pl.pallas_call(
        kernel,
        out_shape=jax.ShapeDtypeStruct((N, d_out_p), out_dtype),
        grid_spec=grid_spec,
        compiler_params=pltpu.CompilerParams(
            dimension_semantics=dims,
            vmem_limit_bytes=limit,
        ),
    )(x2d, w_fused, b_fused)

    # Ragged last row block: rows are independent and Pallas masks the partial
    # output writeback, so garbage rows computed past N never reach HBM.
    y = y[:N, :d_out]
    return y.reshape(*orig_shape[:-1], d_out)


# --------------------------------------------------------------------------
# Demo / correctness checks
# --------------------------------------------------------------------------

def init_linear_params(key, in_dim, out_dim, dtype=jnp.float32):
    """Deterministic init matching nn.Linear: U(-1/sqrt(in), 1/sqrt(in))."""
    kw_, kb_ = jax.random.split(key)
    bound = 1.0 / math.sqrt(in_dim)
    w = jax.random.uniform(kw_, (out_dim, in_dim), dtype, -bound, bound)
    b = jax.random.uniform(kb_, (out_dim,), dtype, -bound, bound)
    return w, b


def glu_reference(x, w1, b1, w2, b2):
    return (x @ w1.T + b1) * jax.nn.sigmoid(x @ w2.T + b2)


if __name__ == "__main__":
    key = jax.random.PRNGKey(0)
    k_x, k_w1, k_w2, k_x2, k_w3, k_w4, k_x3 = jax.random.split(key, 7)

    # Primary small example: batch=2, seq=8, input_dim=32, output_dim=32.
    batch, seq, input_dim, output_dim = 2, 8, 32, 32
    x = jax.random.normal(k_x, (batch, seq, input_dim), jnp.float32)
    w1, b1 = init_linear_params(k_w1, input_dim, output_dim)
    w2, b2 = init_linear_params(k_w2, input_dim, output_dim)
    ref = glu_reference(x, w1, b1, w2, b2)

    # 1) exact f32 compute path (resident weight)
    wf, bf, d_out, d_out_p = prepare_glu_params(w1, b1, w2, b2,
                                                compute_dtype=jnp.float32)
    y_f32 = glu_forward(x, wf, bf, d_out, d_out_p)
    jax.block_until_ready(y_f32)
    assert y_f32.shape == ref.shape
    assert jnp.allclose(y_f32, ref, atol=1e-5, rtol=1e-5), "f32 mismatch"

    # 2) default bf16 fast path (f32 accumulate, approx-reciprocal sigmoid)
    wb, bb, _, _ = prepare_glu_params(w1, b1, w2, b2)
    y_bf16 = glu_forward(x, wb, bb, d_out, d_out_p)
    jax.block_until_ready(y_bf16)
    assert jnp.allclose(y_bf16, ref, atol=3e-2, rtol=3e-2), "bf16 mismatch"

    # 3) ragged row count (exercises masked partial row blocks, no jnp.pad)
    xr = jax.random.normal(k_x3, (3, 7, input_dim), jnp.float32)
    refr = glu_reference(xr, w1, b1, w2, b2)
    yr = glu_forward(xr, wb, bb, d_out, d_out_p)
    jax.block_until_ready(yr)
    assert yr.shape == refr.shape
    assert jnp.allclose(yr, refr, atol=3e-2, rtol=3e-2), "ragged mismatch"

    # 4) forced K-tiled fallback (the v7x large-weight path), f32 compute
    d_in2, d_out2 = 256, 64
    x2 = jax.random.normal(k_x2, (batch, seq, d_in2), jnp.float32)
    w3, b3 = init_linear_params(k_w3, d_in2, d_out2)
    w4, b4 = init_linear_params(k_w4, d_in2, d_out2)
    ref2 = glu_reference(x2, w3, b3, w4, b4)
    wk, bk, d_o2, d_o2p = prepare_glu_params(w3, b3, w4, b4,
                                             compute_dtype=jnp.float32)
    y_k = glu_forward(x2, wk, bk, d_o2, d_o2p, k_tile=128)
    jax.block_until_ready(y_k)
    assert y_k.shape == ref2.shape
    assert jnp.allclose(y_k, ref2, atol=1e-3, rtol=1e-3), "k-tiled mismatch"

    print("KERNEL_OK")
</pallas_src>

<mosaic_0001>
module attributes {stable_mosaic.version = 11 : i64} {
  func.func @glu_kernel_resident(%arg0: i32, %arg1: memref<16x32xf32, #tpu.memory_space<vmem>>, %arg2: memref<32x256xf32, #tpu.memory_space<vmem>>, %arg3: memref<1x256xf32, #tpu.memory_space<vmem>>, %arg4: memref<16x128xf32, #tpu.memory_space<vmem>>) attributes {dimension_semantics = [#tpu.dimension_semantics<parallel>], iteration_bounds = array<i64: 1>, scalar_prefetch = 0 : i64, scratch_operands = 0 : i64, tpu.core_type = #tpu.core_type<tc>, window_params = [{transform_indices = @transform_0, window_bounds = array<i64: 16, 32>}, {pipeline_mode = #tpu.pipeline_mode<synchronous>, transform_indices = @transform_1, window_bounds = array<i64: 32, 256>}, {pipeline_mode = #tpu.pipeline_mode<synchronous>, transform_indices = @transform_2, window_bounds = array<i64: 1, 256>}, {transform_indices = @transform_3, window_bounds = array<i64: 16, 128>}]} {
    %c0 = arith.constant 0 : index
    %c0_0 = arith.constant 0 : index
    %0 = vector.load %arg1[%c0, %c0_0] : memref<16x32xf32, #tpu.memory_space<vmem>>, vector<16x32xf32>
    %c0_1 = arith.constant 0 : index
    %c0_2 = arith.constant 0 : index
    %1 = vector.load %arg2[%c0_1, %c0_2] : memref<32x256xf32, #tpu.memory_space<vmem>>, vector<32x256xf32>
    %cst = arith.constant dense<0.000000e+00> : vector<16x256xf32>
    %2 = tpu.matmul %0, %1, %cst {dimension_numbers = #tpu.dot_dimension_numbers<[1], [0], [0], [1], [0, 0, 1, 1], [], []>} : vector<16x32xf32>, vector<32x256xf32>, vector<16x256xf32> -> vector<16x256xf32>
    %c0_3 = arith.constant 0 : index
    %c0_4 = arith.constant 0 : index
    %3 = vector.load %arg3[%c0_3, %c0_4] : memref<1x256xf32, #tpu.memory_space<vmem>>, vector<1x256xf32>
    %4 = vector.broadcast %3 : vector<1x256xf32> to vector<16x256xf32>
    %5 = arith.addf %2, %4 : vector<16x256xf32>
    %6 = vector.extract_strided_slice %5 {offsets = [0, 0], sizes = [16, 128], strides = [1, 1]} : vector<16x256xf32> to vector<16x128xf32>
    %7 = vector.extract_strided_slice %5 {offsets = [0, 128], sizes = [16, 128], strides = [1, 1]} : vector<16x256xf32> to vector<16x128xf32>
    %8 = arith.negf %7 : vector<16x128xf32>
    %9 = math.exp %8 : vector<16x128xf32>
    %cst_5 = arith.constant 1.000000e+00 : f32
    %10 = vector.broadcast %cst_5 : f32 to vector<16x128xf32>
    %11 = arith.addf %10, %9 : vector<16x128xf32>
    %12 = arith.divf %10, %11 : vector<16x128xf32>
    %13 = arith.mulf %6, %12 : vector<16x128xf32>
    %c0_6 = arith.constant 0 : index
    %c0_7 = arith.constant 0 : index
    %14 = vector.load %arg4[%c0_6, %c0_7] : memref<16x128xf32, #tpu.memory_space<vmem>>, vector<16x128xf32>
    tpu.vector_store %arg4[%c0_6, %c0_7], %13 {strides = array<i32>} : memref<16x128xf32, #tpu.memory_space<vmem>>, vector<16x128xf32>,
    return
  }
  func.func @transform_0(%arg0: i32) -> (i32, i32) {
    %c0_i32 = arith.constant 0 : i32
    %c0_i32_0 = arith.constant 0 : i32
    return %arg0, %c0_i32 : i32, i32
  }
  func.func @transform_1(%arg0: i32) -> (i32, i32) {
    %c0_i32 = arith.constant 0 : i32
    %c0_i32_0 = arith.constant 0 : i32
    %c0_i32_1 = arith.constant 0 : i32
    return %c0_i32, %c0_i32_0 : i32, i32
  }
  func.func @transform_2(%arg0: i32) -> (i32, i32) {
    %c0_i32 = arith.constant 0 : i32
    %c0_i32_0 = arith.constant 0 : i32
    %c0_i32_1 = arith.constant 0 : i32
    return %c0_i32, %c0_i32_0 : i32, i32
  }
  func.func @transform_3(%arg0: i32) -> (i32, i32) {
    %c0_i32 = arith.constant 0 : i32
    %c0_i32_0 = arith.constant 0 : i32
    return %arg0, %c0_i32 : i32, i32
  }
}

</mosaic_0001>

<llo_original>
// kernel: tpu_custom_call.1
$region0: #{tpu_custom_call.1}
  #allocation0 [shape = 'u32[]', space=smem, size = 0x4, offset = 0x4, fixed_abs, tag = 'smem constant byte address 0x4 - core index']
  #allocation1 [shape = 'u32[144,128]{1,0:T(1,128)}', space=vmem, size = 0x12000, scoped, tag = 'internal scratch']
  %s0 = inlined_call_operand.hbm [shape: f32[16,32], index: 0, kind: input, shape index: {}]
  %s1 = inlined_call_operand.hbm [shape: f32[32,256], index: 1, kind: input, shape index: {}]
  %s2 = inlined_call_operand.vmem [shape: f32[1,256], index: 2, kind: input, shape index: {}]
  %s3 = inlined_call_operand.hbm [shape: f32[16,128], index: 3, kind: output, shape index: {}]
  %s4 = sld [smem:[#allocation0]]
  $region30: #{tpu_custom_call.1} parent=0
    _
  %s6 = ssub.s32 1, %s4
  %s7 = scalar_select 0, %s6, %s4
  $region1: #{tpu_custom_call.1} parent=0
    #allocation2 [shape = 'u8[8192]{0}', space=vmem, size = 0x2000, scoped, tag = 'input window, operand 0, single buffered']
    #allocation3 [shape = 's32[1]{0}', space=sflag, size = 0x4, scoped, tag = 'scoped memory for tpu_custom_call.1']
    #allocation4 [shape = 's32[1]{0}', space=sflag, size = 0x4, scoped, tag = 'scoped memory for tpu_custom_call.1']
    #allocation5 [shape = 'u8[32768]{0}', space=vmem, size = 0x8000, scoped, tag = 'input window, operand 1, single buffered']
    #allocation6 [shape = 's32[1]{0}', space=sflag, size = 0x4, scoped, tag = 'scoped memory for tpu_custom_call.1']
    #allocation7 [shape = 'u8[8192]{0}', space=vmem, size = 0x2000, scoped, tag = 'output window, operand 0, single buffered']
    %8 = vsyncpa [#allocation3], 0
    %9 = vsyncpa [#allocation6], 0
    %10 = vsyncpa [#allocation4], 0
    // Predicated region
    $region2: #{tpu_custom_call.1} parent=1 // pred_check
      _
    $region3: #{tpu_custom_call.1} parent=1 // pred_check_branch
      %12 = sbr.rel (0) target = $region5
    $region4: #{tpu_custom_call.1} parent=1 // pred_region
      %s14 = ssub.s32 256, 256
      %15 = vsyncadd [#allocation3], %s14
      %s16 = sshll.u32 [#allocation2], 4
      %s17 = int_to_ptr.vmem [resolvable:$true] %s16
      %22 = dma.hbm_to_vmem [thread:$0]  %s0, 256, %s17, [#allocation3], 128, 128, 8
    $region5: #{tpu_custom_call.1} parent=1 // pred_fallthru
      _
    // Predicated region
    $region6: #{tpu_custom_call.1} parent=1 // pred_check
      _
    $region7: #{tpu_custom_call.1} parent=1 // pred_check_branch
      %24 = sbr.rel (0) target = $region9
    $region8: #{tpu_custom_call.1} parent=1 // pred_region
      %s26 = ssub.s32 1024, 1024
      %27 = vsyncadd [#allocation6], %s26
      %s28 = sshll.u32 [#allocation5], 4
      %s29 = int_to_ptr.vmem [resolvable:$true] %s28
      %34 = dma.hbm_to_vmem [thread:$0]  %s1, 1024, %s29, [#allocation6], 256, 256, 16
    $region9: #{tpu_custom_call.1} parent=1 // pred_fallthru
      _
    // Predicated region
    $region10: #{tpu_custom_call.1} parent=1 // pred_check
      _
    $region11: #{tpu_custom_call.1} parent=1 // pred_check_branch
      %36 = sbr.rel (0) target = $region13
    $region12: #{tpu_custom_call.1} parent=1 // pred_region
      _
    $region13: #{tpu_custom_call.1} parent=1 // pred_fallthru
      _
    // Predicated region
    $region14: #{tpu_custom_call.1} parent=1 // pred_check
      _
    $region15: #{tpu_custom_call.1} parent=1 // pred_check_branch
      %38 = sbr.rel (0) target = $region17
    $region16: #{tpu_custom_call.1} parent=1 // pred_region
      %39 = dma.done [#allocation3], 256
    $region17: #{tpu_custom_call.1} parent=1 // pred_fallthru
      _
    // Predicated region
    $region18: #{tpu_custom_call.1} parent=1 // pred_check
      _
    $region19: #{tpu_custom_call.1} parent=1 // pred_check_branch
      %41 = sbr.rel (0) target = $region21
    $region20: #{tpu_custom_call.1} parent=1 // pred_region
      %42 = dma.done [#allocation6], 1024
    $region21: #{tpu_custom_call.1} parent=1 // pred_fallthru
      _
    %v43 = vld [vmem:[#allocation2] sm:$0xff]
    %v44 = vld [vmem:[#allocation2 + $0x8] sm:$0xff]
    %v45 = vld [vmem:[#allocation5] sm:$0xff]
    %v46 = vld [vmem:[#allocation5 + $0x8] sm:$0xff]
    %v47 = vld [vmem:[#allocation5 + $0x10] sm:$0xff]
    %v48 = vld [vmem:[#allocation5 + $0x18] sm:$0xff]
    %v49 = vld [vmem:[#allocation5 + $0x20] sm:$0xff]
    %v50 = vld [vmem:[#allocation5 + $0x28] sm:$0xff]
    %v51 = vld [vmem:[#allocation5 + $0x30] sm:$0xff]
    %v52 = vld [vmem:[#allocation5 + $0x38] sm:$0xff]
    %v53 = vld [vmem:[%s2] sm:$0x3]
    %v55 = vlaneseq
    %v56 = vshrl.u32 %v55, 7
    %v57 = vsub.s32 0, %v56
    %v58 = vrot.slane %v53, %v57
    %v59 = vlaneseq
    %v60 = vshrl.u32 %v59, 7
    %v61 = vsub.s32 1, %v60
    %v62 = vrot.slane %v53, %v61
    %vm65 = vcmask 261120
    %v67 = vsel %vm65, %v43, 0
    %v70 = vsel %vm65, %v44, 0
    %72 = vmatprep.subr.mxu0 0.0
    %73 = vmatpush1.msra.mxu0 0.0
    %74 = vmatprep.subr.mxu0 0.0
    %75 = vmatpush1.msra.mxu0 0.0
    %76 = vmatprep.subr.mxu0 0.0
    %77 = vmatpush1.msra.mxu0 0.0
    %78 = vmatprep.subr.mxu0 0.0
    %79 = vmatpush1.msra.mxu0 0.0
    %80 = vmatprep.subr.mxu0 0.0
    %81 = vmatpush1.msra.mxu0 0.0
    %82 = vmatprep.subr.mxu0 0.0
    %83 = vmatpush1.msra.mxu0 0.0
    %84 = vmatprep.subr.mxu0 0.0
    %85 = vmatpush1.msra.mxu0 0.0
    %86 = vmatprep.subr.mxu0 0.0
    %87 = vmatpush1.msra.mxu0 0.0
    %88 = vmatprep.subr.mxu0 0.0
    %89 = vmatpush1.msra.mxu0 0.0
    %90 = vmatprep.subr.mxu0 0.0
    %91 = vmatpush1.msra.mxu0 0.0
    %92 = vmatprep.subr.mxu0 0.0
    %93 = vmatpush1.msra.mxu0 0.0
    %94 = vmatprep.subr.mxu0 0.0
    %95 = vmatpush1.msra.mxu0 0.0
    %96 = vmatprep.subr.mxu0 %v52
    %97 = vmatpush1.msra.mxu0 %v51
    %98 = vmatprep.subr.mxu0 %v50
    %99 = vmatpush1.msra.mxu0 %v49
    %100 = vmatprep.subr.mxu0 %v48
    %101 = vmatpush1.msra.mxu0 %v47
    %102 = vmatprep.subr.mxu0 %v46
    %103 = vmatpush1.msra.mxu0 %v45
    %104 = vmatprep.subr.mxu0 0.0
    %105 = vmatpush2.msra.mxu0 0.0
    %106 = vmatprep.subr.mxu0 0.0
    %107 = vmatpush2.msra.mxu0 0.0
    %108 = vmatprep.subr.mxu0 0.0
    %109 = vmatpush2.msra.mxu0 0.0
    %110 = vmatprep.subr.mxu0 0.0
    %111 = vmatpush2.msra.mxu0 0.0
    %112 = vmatprep.subr.mxu0 0.0
    %113 = vmatpush2.msra.mxu0 0.0
    %114 = vmatprep.subr.mxu0 0.0
    %115 = vmatpush2.msra.mxu0 0.0
    %116 = vmatprep.subr.mxu0 0.0
    %117 = vmatpush2.msra.mxu0 0.0
    %118 = vmatprep.subr.mxu0 0.0
    %119 = vmatpush2.msra.mxu0 0.0
    %120 = vmatprep.subr.mxu0 0.0
    %121 = vmatpush2.msra.mxu0 0.0
    %122 = vmatprep.subr.mxu0 0.0
    %123 = vmatpush2.msra.mxu0 0.0
    %124 = vmatprep.subr.mxu0 0.0
    %125 = vmatpush2.msra.mxu0 0.0
    %126 = vmatprep.subr.mxu0 0.0
    %127 = vmatpush2.msra.mxu0 0.0
    %128 = vmatprep.subr.mxu0 0.0
    %129 = vmatpush2.msra.mxu0 0.0
    %130 = vmatprep.subr.mxu0 0.0
    %131 = vmatpush2.msra.mxu0 0.0
    %132 = vmatprep.subr.mxu0 0.0
    %133 = vmatpush2.msra.mxu0 0.0
    %134 = vmatprep.subr.mxu0 0.0
    %135 = vmatpush2.msra.mxu0 0.0
    %136 = vmatprep.mubr.f32.mxu0 0.0
    %137 = vmatmul.mubr.f32.gmra.mxu0 %v67
    %v138 = vpop.f32.mrf.mxu0
    %v139 = vadd.f32 %v58, %v138
    %v140 = vpop.f32.mrf.mxu0
    %v141 = vadd.f32 %v62, %v140
    %142 = vmatprep.mubr.f32.mxu0 0.0
    %143 = vmatmul.mubr.f32.gmra.mxu0 %v70
    %v144 = vpop.f32.mrf.mxu0
    %v145 = vadd.f32 %v58, %v144
    %v146 = vpop.f32.mrf.mxu0
    %v147 = vadd.f32 %v62, %v146
    %148 = vdwg.mxu0
    %v149 = vxor.u32 %v141, 2147483648
    %v150 = vxor.u32 %v147, 2147483648
    %v151 = vmul.f32 %v149, 1.442695
    %v152 = vpow.pop %v151
    %v153 = vmul.f32 %v150, 1.442695
    %v154 = vpow.pop %v153
    %v155 = vadd.f32 %v152, 1.0
    %v156 = vadd.f32 %v154, 1.0
    %v157 = vrcp.pop %v155
    %v158 = vmul.f32 1.0, %v157
    %v159 = vrcp.pop %v156
    %v160 = vmul.f32 1.0, %v159
    %v161 = vmul.f32 %v139, %v158
    %v162 = vmul.f32 %v145, %v160
    %163 = vst [vmem:[#allocation7] sm:$0xff] %v161
    %164 = vst [vmem:[#allocation7 + $0x8] sm:$0xff] %v162
    // Predicated region
    $region22: #{tpu_custom_call.1} parent=1 // pred_check
      _
    $region23: #{tpu_custom_call.1} parent=1 // pred_check_branch
      %166 = sbr.rel (0) target = $region25
    $region24: #{tpu_custom_call.1} parent=1 // pred_region
      %s168 = ssub.s32 256, 256
      %169 = vsyncadd [#allocation4], %s168
      %s170 = sshll.u32 [#allocation7], 4
      %s171 = int_to_ptr.vmem [resolvable:$true] %s170
      %176 = dma.vmem_to_hbm [thread:$0]  %s171, 256, %s3, [#allocation4], 128, 128, 8
    $region25: #{tpu_custom_call.1} parent=1 // pred_fallthru
      _
    // Predicated region
    $region26: #{tpu_custom_call.1} parent=1 // pred_check
      _
    $region27: #{tpu_custom_call.1} parent=1 // pred_check_branch
      %178 = sbr.rel (0) target = $region29
    $region28: #{tpu_custom_call.1} parent=1 // pred_region
      %179 = dma.done [#allocation4], 256
    $region29: #{tpu_custom_call.1} parent=1 // pred_fallthru
      _
    %180 = vsyncpa [#allocation3], 1
    %181 = vsyncpa [#allocation6], 1
    %182 = vsyncpa [#allocation4], 1

</llo_original>
